<compile_context>
chip_gen: v7x
topology: tpu7x:2x2x1
jax: 0.10.0
libtpu: 0.0.40
codegen_flags: <defaults>
</compile_context>

<pallas_src>
import functools

import jax
import jax.numpy as jnp
from jax.experimental import pallas as pl
from jax.experimental.pallas import tpu as pltpu


def _round_up(x, m):
    return -(-x // m) * m


def _mlp_kernel(*refs):
    """refs = (act, W0f, b0f, [W_i, b_i]*, w_aff, b_aff, out).

    Activations are a [feature, TB] bf16 tile (batch on the lane axis); all
    weights/biases are VMEM-resident constants.
    """
    out_ref = refs[-1]                       # (1, TB) f32, lane-dense
    act_ref, w0_ref, b0_ref = refs[0], refs[1], refs[2]
    waff_ref, baff_ref = refs[-3], refs[-2]
    layer_refs = refs[3:-3]                  # (W_i, b_i) pairs for fc[1:], possibly empty

    # fc[0] (user_profile / item_attr linears folded in): single K=kc matmul.
    x = jnp.dot(w0_ref[...], act_ref[...],
                preferred_element_type=jnp.float32) + b0_ref[...]
    x = jnp.maximum(x, 0.0)

    # Remaining fc layers (each followed by ReLU, matching nn.Sequential).
    for li in range(len(layer_refs) // 2):
        w = layer_refs[2 * li][...]
        b = layer_refs[2 * li + 1][...]
        x = jnp.dot(w, x.astype(jnp.bfloat16),
                    preferred_element_type=jnp.float32) + b
        x = jnp.maximum(x, 0.0)

    # Affine head (H_last -> 1): lane-broadcast multiply + sublane reduction
    # produces the lane-dense (1, TB) output row directly (no masked stores).
    out_ref[...] = jnp.sum(x * waff_ref[...], axis=0, keepdims=True) + baff_ref[...]


def _fold_fc0(params):
    """Fold the user_profile / item_attr linears into fc[0] (exact pre-ReLU)."""
    w_up, b_up = params["user_profile"]     # (h0, d_up), (h0,)
    w_ia, b_ia = params["item_attr"]        # (h0, d_ia), (h0,)
    w0, b0 = params["fc"][0]                # (H1, 4*h0), (H1,)
    h0 = w_up.shape[0]
    w0a, w0b = w0[:, :h0], w0[:, h0:2 * h0]
    w0c, w0d = w0[:, 2 * h0:3 * h0], w0[:, 3 * h0:]
    w0f = jnp.concatenate([w0a, w0b, w0c @ w_up, w0d @ w_ia], axis=1)
    b0f = b0 + w0c @ b_up + w0d @ b_ia
    return w0f, b0f                         # (H1, 2*h0+d_up+d_ia), (H1,)


def mlp_forward(user, item, user_profile, item_attr, params, *, block_batch=4096):
    """Returns target_rating of shape [B] (== affine(fc(...)).view(-1))."""
    w_up, _ = params["user_profile"]
    w_ia, _ = params["item_attr"]
    h0, d_up = w_up.shape
    d_ia = w_ia.shape[1]

    # Embedding gathers (bias embedding broadcasts over the hidden dim). Kept
    # in XLA so that gather + concat + transpose + pad + bf16 cast fuse into a
    # single pass over the activations when this wrapper is jitted.
    # TODO(synk): gathers could move fully in-kernel via scalar prefetch +
    #             pl.Element row BlockSpecs if the extra HBM pass ever matters.
    ue = params["user_weight"][user] + params["user_bias"][user]    # [B, h0]
    ie = params["item_weight"][item] + params["item_bias"][item]    # [B, h0]

    # Offline fold of the up/ia linears into fc[0].
    w0f, b0f = _fold_fc0(params)
    h1, kc = w0f.shape                      # kc = 2*h0 + d_up + d_ia
    kc_pad = _round_up(kc, 16)              # bf16 sublane packing

    # Batch tiling: batch on the lane axis. Clamp the tile so there are >= 2
    # grid steps whenever the batch allows it (v7x megacore has 2 TCs), without
    # padding tiny batches past a single 128-lane tile.
    B = int(ue.shape[0])
    tb = max(128, min(block_batch, _round_up(-(-B // 2), 128)))
    b_pad = _round_up(B, tb)
    n_grid = b_pad // tb

    # One pre-packed [kc_pad, b_pad] bf16 activation slab: no in-kernel staging
    # scratch, one input DMA stream per step, half the activation bytes.
    act = jnp.concatenate([ue, ie, user_profile, item_attr],
                          axis=-1).astype(jnp.float32).T               # [kc, B]
    act = jnp.pad(act, ((0, kc_pad - kc), (0, b_pad - B))).astype(jnp.bfloat16)

    w0f_p = jnp.pad(w0f, ((0, 0), (0, kc_pad - kc))).astype(jnp.bfloat16)

    def const_spec(shape):
        # Constant index_map -> single-buffered, stays VMEM-resident.
        return pl.BlockSpec(shape, lambda i: (0, 0), pipeline_mode=pl.Buffered(1))

    args = [act, w0f_p, b0f.reshape(h1, 1).astype(jnp.float32)]
    in_specs = [pl.BlockSpec((kc_pad, tb), lambda i: (0, i)),
                const_spec((h1, kc_pad)),
                const_spec((h1, 1))]

    flops_per_col = 2 * kc_pad * h1
    hidden_sum = h1
    for w, b in params["fc"][1:]:
        args += [w.astype(jnp.bfloat16), b.reshape(-1, 1).astype(jnp.float32)]
        in_specs += [const_spec(tuple(w.shape)), const_spec((w.shape[0], 1))]
        flops_per_col += 2 * w.shape[0] * w.shape[1]
        hidden_sum += w.shape[0]

    w_aff, b_aff = params["affine"]          # (1, H_last), (1,)
    h_last = w_aff.shape[1]
    args += [w_aff.T.astype(jnp.float32), b_aff.reshape(1, 1).astype(jnp.float32)]
    in_specs += [const_spec((h_last, 1)), const_spec((1, 1))]
    flops_per_col += 2 * h_last

    # VMEM budget derived from actual buffer sizes; keep headroom under v7x's
    # 64 MiB physical VMEM (v5e/v6e have 128 MiB, so the same budget is safe).
    wgt_bytes = sum(int(a.size) * a.dtype.itemsize for a in args[1:])
    act_buf = 2 * kc_pad * tb * 2            # double-buffered bf16 activation tile
    out_buf = 2 * tb * 4                     # double-buffered f32 output row
    inter_buf = 4 * tb * hidden_sum          # rough f32 intermediate footprint
    vmem_limit = int(min(64 << 20,
                         max(16 << 20,
                             2 * (wgt_bytes + act_buf + out_buf + inter_buf) + (4 << 20))))

    bytes_accessed = int(act.size) * 2 + wgt_bytes + b_pad * 4

    out = pl.pallas_call(
        _mlp_kernel,
        out_shape=jax.ShapeDtypeStruct((1, b_pad), jnp.float32),
        grid_spec=pltpu.PrefetchScalarGridSpec(
            num_scalar_prefetch=0,
            grid=(n_grid,),
            in_specs=in_specs,
            out_specs=pl.BlockSpec((1, tb), lambda i: (0, i)),
        ),
        compiler_params=pltpu.CompilerParams(
            dimension_semantics=("parallel",),   # v7x: shard batch tiles over 2 TCs
            vmem_limit_bytes=vmem_limit,
        ),
        cost_estimate=pl.CostEstimate(
            flops=int(b_pad * flops_per_col),
            transcendentals=0,
            bytes_accessed=int(bytes_accessed)),
    )(*args)
    return out.reshape(-1)[:B]


# ----------------------------- parameters ---------------------------------- #

def _linear_init(key, fan_in, fan_out, zero_bias):
    """PyTorch nn.Linear-style init; weight kept in PyTorch [out, in] layout."""
    kw, kb = jax.random.split(key)
    bound = 1.0 / (fan_in ** 0.5)
    w = jax.random.uniform(kw, (fan_out, fan_in), jnp.float32, -bound, bound)
    if zero_bias:
        b = jnp.zeros((fan_out,), jnp.float32)
    else:
        b = jax.random.uniform(kb, (fan_out,), jnp.float32, -bound, bound)
    return w, b


def init_params(key, num_users, num_items, hidden_size, info_size):
    h0 = hidden_size[0]
    n_fc = len(hidden_size) - 1
    keys = jax.random.split(key, 5 + n_fc)
    params = {
        "user_weight": 0.01 * jax.random.normal(keys[0], (num_users, h0), jnp.float32),
        "item_weight": 0.01 * jax.random.normal(keys[1], (num_items, h0), jnp.float32),
        "user_bias": jnp.zeros((num_users, 1), jnp.float32),
        "item_bias": jnp.zeros((num_items, 1), jnp.float32),
        "user_profile": _linear_init(keys[2], info_size["user_profile"], h0, zero_bias=False),
        "item_attr": _linear_init(keys[3], info_size["item_attr"], h0, zero_bias=False),
    }
    fc = []
    for i in range(n_fc):
        in_size = 4 * h0 if i == 0 else hidden_size[i]   # 2*h0 + user_profile + item_attr
        fc.append(_linear_init(keys[4 + i], in_size, hidden_size[i + 1], zero_bias=True))
    params["fc"] = fc
    params["affine"] = _linear_init(keys[4 + n_fc], hidden_size[-1], 1, zero_bias=True)
    return params


# ----------------------------- references ---------------------------------- #

def reference_forward(user, item, user_profile, item_attr, params):
    """Pure-JAX f32 mirror of the PyTorch forward (eval branch)."""
    ue = params["user_weight"][user] + params["user_bias"][user]
    ie = params["item_weight"][item] + params["item_bias"][item]
    w_up, b_up = params["user_profile"]
    w_ia, b_ia = params["item_attr"]
    upl = user_profile @ w_up.T + b_up
    ial = item_attr @ w_ia.T + b_ia
    x = jnp.concatenate([ue, ie, upl, ial], axis=-1)
    for w, b in params["fc"]:
        x = jnp.maximum(x @ w.T + b, 0.0)
    w_aff, b_aff = params["affine"]
    return (x @ w_aff.T + b_aff).reshape(-1)


def folded_bf16_reference(user, item, user_profile, item_attr, params):
    """Mirror of the exact kernel numerics (offline fold + bf16 MXU inputs)."""
    ue = params["user_weight"][user] + params["user_bias"][user]
    ie = params["item_weight"][item] + params["item_bias"][item]
    w0f, b0f = _fold_fc0(params)

    def bdot(a, w):
        return jnp.dot(a.astype(jnp.bfloat16), w.astype(jnp.bfloat16).T,
                       preferred_element_type=jnp.float32)

    x = jnp.concatenate([ue, ie, user_profile, item_attr], axis=-1).astype(jnp.float32)
    x = jnp.maximum(bdot(x, w0f) + b0f, 0.0)
    for w, b in params["fc"][1:]:
        x = jnp.maximum(bdot(x, w) + b, 0.0)
    w_aff, b_aff = params["affine"]
    return (x @ w_aff.astype(jnp.float32).T + b_aff).reshape(-1)


# --------------------------------- demo ------------------------------------ #

if __name__ == "__main__":
    num_users, num_items = 20, 30
    hidden_size = [32, 32, 16]
    info_size = {"user_profile": 8, "item_attr": 8}
    B = 8

    key = jax.random.PRNGKey(0)
    k_u, k_i, k_r, k_up, k_ia, k_p = jax.random.split(key, 6)
    user = jax.random.randint(k_u, (B,), 0, num_users)
    item = jax.random.randint(k_i, (B,), 0, num_items)
    rating = jax.random.normal(k_r, (B,), jnp.float32)
    user_profile = jax.random.normal(k_up, (B, info_size["user_profile"]), jnp.float32)
    item_attr = jax.random.normal(k_ia, (B, info_size["item_attr"]), jnp.float32)

    params = init_params(k_p, num_users, num_items, hidden_size, info_size)

    forward = jax.jit(mlp_forward)   # fuses gather+concat+transpose+cast preamble
    pred = forward(user, item, user_profile, item_attr, params)
    # TODO(synk): loss_fn is defined outside the module source; MSE assumed here.
    loss = jnp.mean((pred - rating) ** 2)
    output = {"target_rating": pred, "loss": loss}
    jax.block_until_ready(output)

    assert pred.shape == (B,)
    ref_exact = folded_bf16_reference(user, item, user_profile, item_attr, params)
    ref_f32 = reference_forward(user, item, user_profile, item_attr, params)
    assert jnp.allclose(pred, ref_exact, atol=5e-4, rtol=5e-4), (pred, ref_exact)
    assert jnp.allclose(pred, ref_f32, atol=3e-2, rtol=3e-2), (pred, ref_f32)
    print("KERNEL_OK")
</pallas_src>

<mosaic_0001>
module attributes {stable_mosaic.version = 11 : i64} {
  func.func @_mlp_kernel(%arg0: i32, %arg1: memref<80x128xbf16, #tpu.memory_space<vmem>>, %arg2: memref<32x80xbf16, #tpu.memory_space<vmem>>, %arg3: memref<32x1xf32, #tpu.memory_space<vmem>>, %arg4: memref<16x32xbf16, #tpu.memory_space<vmem>>, %arg5: memref<16x1xf32, #tpu.memory_space<vmem>>, %arg6: memref<16x1xf32, #tpu.memory_space<vmem>>, %arg7: memref<1x1xf32, #tpu.memory_space<vmem>>, %arg8: memref<1x128xf32, #tpu.memory_space<vmem>>) attributes {dimension_semantics = [#tpu.dimension_semantics<parallel>], iteration_bounds = array<i64: 1>, scalar_prefetch = 0 : i64, scratch_operands = 0 : i64, tpu.core_type = #tpu.core_type<tc>, window_params = [{transform_indices = @transform_0, window_bounds = array<i64: 80, 128>}, {pipeline_mode = #tpu.pipeline_mode<synchronous>, transform_indices = @transform_1, window_bounds = array<i64: 32, 80>}, {pipeline_mode = #tpu.pipeline_mode<synchronous>, transform_indices = @transform_2, window_bounds = array<i64: 32, 1>}, {pipeline_mode = #tpu.pipeline_mode<synchronous>, transform_indices = @transform_3, window_bounds = array<i64: 16, 32>}, {pipeline_mode = #tpu.pipeline_mode<synchronous>, transform_indices = @transform_4, window_bounds = array<i64: 16, 1>}, {pipeline_mode = #tpu.pipeline_mode<synchronous>, transform_indices = @transform_5, window_bounds = array<i64: 16, 1>}, {pipeline_mode = #tpu.pipeline_mode<synchronous>, transform_indices = @transform_6, window_bounds = array<i64: 1, 1>}, {transform_indices = @transform_7, window_bounds = array<i64: 1, 128>}]} {
    %c0 = arith.constant 0 : index
    %c0_0 = arith.constant 0 : index
    %0 = vector.load %arg2[%c0, %c0_0] : memref<32x80xbf16, #tpu.memory_space<vmem>>, vector<32x80xbf16>
    %c0_1 = arith.constant 0 : index
    %c0_2 = arith.constant 0 : index
    %1 = vector.load %arg1[%c0_1, %c0_2] : memref<80x128xbf16, #tpu.memory_space<vmem>>, vector<80x128xbf16>
    %cst = arith.constant dense<0.000000e+00> : vector<32x128xf32>
    %2 = tpu.matmul %0, %1, %cst {dimension_numbers = #tpu.dot_dimension_numbers<[1], [0], [0], [1], [0, 0, 1, 1], [], []>} : vector<32x80xbf16>, vector<80x128xbf16>, vector<32x128xf32> -> vector<32x128xf32>
    %c0_3 = arith.constant 0 : index
    %c0_4 = arith.constant 0 : index
    %3 = vector.load %arg3[%c0_3, %c0_4] : memref<32x1xf32, #tpu.memory_space<vmem>>, vector<32x1xf32>
    %4 = vector.broadcast %3 : vector<32x1xf32> to vector<32x128xf32>
    %5 = arith.addf %2, %4 : vector<32x128xf32>
    %cst_5 = arith.constant 0.000000e+00 : f32
    %6 = vector.broadcast %cst_5 : f32 to vector<32x128xf32>
    %7 = arith.maximumf %5, %6 : vector<32x128xf32>
    %c0_6 = arith.constant 0 : index
    %c0_7 = arith.constant 0 : index
    %8 = vector.load %arg4[%c0_6, %c0_7] : memref<16x32xbf16, #tpu.memory_space<vmem>>, vector<16x32xbf16>
    %c0_8 = arith.constant 0 : index
    %c0_9 = arith.constant 0 : index
    %9 = vector.load %arg5[%c0_8, %c0_9] : memref<16x1xf32, #tpu.memory_space<vmem>>, vector<16x1xf32>
    %10 = arith.truncf %7 : vector<32x128xf32> to vector<32x128xbf16>
    %cst_10 = arith.constant dense<0.000000e+00> : vector<16x128xf32>
    %11 = tpu.matmul %8, %10, %cst_10 {dimension_numbers = #tpu.dot_dimension_numbers<[1], [0], [0], [1], [0, 0, 1, 1], [], []>} : vector<16x32xbf16>, vector<32x128xbf16>, vector<16x128xf32> -> vector<16x128xf32>
    %12 = vector.broadcast %9 : vector<16x1xf32> to vector<16x128xf32>
    %13 = arith.addf %11, %12 : vector<16x128xf32>
    %cst_11 = arith.constant 0.000000e+00 : f32
    %14 = vector.broadcast %cst_11 : f32 to vector<16x128xf32>
    %15 = arith.maximumf %13, %14 : vector<16x128xf32>
    %c0_12 = arith.constant 0 : index
    %c0_13 = arith.constant 0 : index
    %16 = vector.load %arg6[%c0_12, %c0_13] : memref<16x1xf32, #tpu.memory_space<vmem>>, vector<16x1xf32>
    %17 = vector.broadcast %16 : vector<16x1xf32> to vector<16x128xf32>
    %18 = arith.mulf %15, %17 : vector<16x128xf32>
    %cst_14 = arith.constant dense<0.000000e+00> : vector<128xf32>
    %19 = vector.multi_reduction <add>, %18, %cst_14 [0] : vector<16x128xf32> to vector<128xf32>
    %20 = vector.shape_cast %19 : vector<128xf32> to vector<1x128xf32>
    %c0_15 = arith.constant 0 : index
    %c0_16 = arith.constant 0 : index
    %21 = vector.load %arg7[%c0_15, %c0_16] : memref<1x1xf32, #tpu.memory_space<vmem>>, vector<1x1xf32>
    %22 = vector.broadcast %21 : vector<1x1xf32> to vector<1x128xf32>
    %23 = arith.addf %20, %22 : vector<1x128xf32>
    %c0_17 = arith.constant 0 : index
    %c0_18 = arith.constant 0 : index
    %24 = vector.load %arg8[%c0_17, %c0_18] : memref<1x128xf32, #tpu.memory_space<vmem>>, vector<1x128xf32>
    tpu.vector_store %arg8[%c0_17, %c0_18], %23 {strides = array<i32>} : memref<1x128xf32, #tpu.memory_space<vmem>>, vector<1x128xf32>,
    return
  }
  func.func @transform_0(%arg0: i32) -> (i32, i32) {
    %c0_i32 = arith.constant 0 : i32
    %c0_i32_0 = arith.constant 0 : i32
    return %c0_i32, %arg0 : i32, i32
  }
  func.func @transform_1(%arg0: i32) -> (i32, i32) {
    %c0_i32 = arith.constant 0 : i32
    %c0_i32_0 = arith.constant 0 : i32
    %c0_i32_1 = arith.constant 0 : i32
    return %c0_i32, %c0_i32_0 : i32, i32
  }
  func.func @transform_2(%arg0: i32) -> (i32, i32) {
    %c0_i32 = arith.constant 0 : i32
    %c0_i32_0 = arith.constant 0 : i32
    %c0_i32_1 = arith.constant 0 : i32
    return %c0_i32, %c0_i32_0 : i32, i32
  }
  func.func @transform_3(%arg0: i32) -> (i32, i32) {
    %c0_i32 = arith.constant 0 : i32
    %c0_i32_0 = arith.constant 0 : i32
    %c0_i32_1 = arith.constant 0 : i32
    return %c0_i32, %c0_i32_0 : i32, i32
  }
  func.func @transform_4(%arg0: i32) -> (i32, i32) {
    %c0_i32 = arith.constant 0 : i32
    %c0_i32_0 = arith.constant 0 : i32
    %c0_i32_1 = arith.constant 0 : i32
    return %c0_i32, %c0_i32_0 : i32, i32
  }
  func.func @transform_5(%arg0: i32) -> (i32, i32) {
    %c0_i32 = arith.constant 0 : i32
    %c0_i32_0 = arith.constant 0 : i32
    %c0_i32_1 = arith.constant 0 : i32
    return %c0_i32, %c0_i32_0 : i32, i32
  }
  func.func @transform_6(%arg0: i32) -> (i32, i32) {
    %c0_i32 = arith.constant 0 : i32
    %c0_i32_0 = arith.constant 0 : i32
    %c0_i32_1 = arith.constant 0 : i32
    return %c0_i32, %c0_i32_0 : i32, i32
  }
  func.func @transform_7(%arg0: i32) -> (i32, i32) {
    %c0_i32 = arith.constant 0 : i32
    %c0_i32_0 = arith.constant 0 : i32
    return %c0_i32, %arg0 : i32, i32
  }
}

</mosaic_0001>

<llo_original>
// kernel: mlp_forward.1
$region0: #{mlp_forward.1}
  #allocation0 [shape = 'u32[]', space=smem, size = 0x4, offset = 0x4, fixed_abs, tag = 'smem constant byte address 0x4 - core index']
  #allocation1 [shape = 'u32[144,128]{1,0:T(1,128)}', space=vmem, size = 0x12000, scoped, tag = 'internal scratch']
  #allocation2 [shape = 'f32[1,1]{1,0:T(1,128)S(1)}', space=vmem, size = 0x200, scoped, tag = 'scoped memory for mlp_forward.1']
  %s0 = inlined_call_operand.vmem [shape: bf16[80,128], index: 0, kind: input, shape index: {}]
  %s1 = inlined_call_operand.vmem [shape: bf16[32,80], index: 1, kind: input, shape index: {}]
  %s2 = inlined_call_operand.vmem [shape: f32[32,1], index: 2, kind: input, shape index: {}]
  %s3 = inlined_call_operand.vmem [shape: bf16[16,32], index: 3, kind: input, shape index: {}]
  %s4 = inlined_call_operand.vmem [shape: f32[16,1], index: 4, kind: input, shape index: {}]
  %s5 = inlined_call_operand.vmem [shape: f32[16,1], index: 5, kind: input, shape index: {}]
  %s6 = inlined_call_operand.<no memory space> [shape: f32[1,1], index: 6, kind: input, shape index: {}]
  %s7 = inlined_call_operand.vmem [shape: f32[1,128], index: 7, kind: output, shape index: {}]
  %s8 = sld [smem:[#allocation0]]
  $region38: #{mlp_forward.1} parent=0
    _
  %s10 = ssub.s32 1, %s8
  %s11 = scalar_select 0, %s10, %s8
  %v12 = vstv %s6
  %13 = vst [vmem:[#allocation2] sm:$0x1] %v12
  // Predicated region
  $region2: #{mlp_forward.1} parent=0 // pred_check
    _
  $region3: #{mlp_forward.1} parent=0 // pred_check_branch
    %15 = sbr.rel (0) target = $region5
  $region4: #{mlp_forward.1} parent=0 // pred_region
    _
  $region5: #{mlp_forward.1} parent=0 // pred_fallthru
    _
  // Predicated region
  $region6: #{mlp_forward.1} parent=0 // pred_check
    _
  $region7: #{mlp_forward.1} parent=0 // pred_check_branch
    %17 = sbr.rel (0) target = $region9
  $region8: #{mlp_forward.1} parent=0 // pred_region
    _
  $region9: #{mlp_forward.1} parent=0 // pred_fallthru
    _
  // Predicated region
  $region10: #{mlp_forward.1} parent=0 // pred_check
    _
  $region11: #{mlp_forward.1} parent=0 // pred_check_branch
    %19 = sbr.rel (0) target = $region13
  $region12: #{mlp_forward.1} parent=0 // pred_region
    _
  $region13: #{mlp_forward.1} parent=0 // pred_fallthru
    _
  // Predicated region
  $region14: #{mlp_forward.1} parent=0 // pred_check
    _
  $region15: #{mlp_forward.1} parent=0 // pred_check_branch
    %21 = sbr.rel (0) target = $region17
  $region16: #{mlp_forward.1} parent=0 // pred_region
    _
  $region17: #{mlp_forward.1} parent=0 // pred_fallthru
    _
  // Predicated region
  $region18: #{mlp_forward.1} parent=0 // pred_check
    _
  $region19: #{mlp_forward.1} parent=0 // pred_check_branch
    %23 = sbr.rel (0) target = $region21
  $region20: #{mlp_forward.1} parent=0 // pred_region
    _
  $region21: #{mlp_forward.1} parent=0 // pred_fallthru
    _
  // Predicated region
  $region22: #{mlp_forward.1} parent=0 // pred_check
    _
  $region23: #{mlp_forward.1} parent=0 // pred_check_branch
    %25 = sbr.rel (0) target = $region25
  $region24: #{mlp_forward.1} parent=0 // pred_region
    _
  $region25: #{mlp_forward.1} parent=0 // pred_fallthru
    _
  // Predicated region
  $region26: #{mlp_forward.1} parent=0 // pred_check
    _
  $region27: #{mlp_forward.1} parent=0 // pred_check_branch
    %27 = sbr.rel (0) target = $region29
  $region28: #{mlp_forward.1} parent=0 // pred_region
    _
  $region29: #{mlp_forward.1} parent=0 // pred_fallthru
    _
  %v29 = vld [vmem:[%s1] sm:$0xf]
  %v30 = vld [vmem:[%s1 + $0x4] sm:$0xf]
  %v31 = vld [vmem:[%s1 + $0x8] sm:$0xf]
  %v32 = vld [vmem:[%s1 + $0xc] sm:$0xf]
  %v33 = vld [vmem:[%s0] sm:$0xf]
  %v34 = vld [vmem:[%s0 + $0x4] sm:$0xf]
  %v35 = vld [vmem:[%s0 + $0x8] sm:$0xf]
  %v36 = vld [vmem:[%s0 + $0xc] sm:$0xf]
  %v37 = vld [vmem:[%s0 + $0x10] sm:$0xf]
  %v38 = vld [vmem:[%s0 + $0x14] sm:$0xf]
  %v39 = vld [vmem:[%s0 + $0x18] sm:$0xf]
  %v40 = vld [vmem:[%s0 + $0x1c] sm:$0xf]
  %v41 = vld [vmem:[%s0 + $0x20] sm:$0xf]
  %v42 = vld [vmem:[%s0 + $0x24] sm:$0xf]
  %v43 = vld [vmem:[%s2] sm:$0xff]
  %v44 = vld [vmem:[%s2 + $0x8] sm:$0xff]
  %v45 = vld [vmem:[%s2 + $0x10] sm:$0xff]
  %v46 = vld [vmem:[%s2 + $0x18] sm:$0xff]
  %48 = vset.pattern.permute.xlu0 0
  %49 = vperm.xlu0 %48, %v43
  %v50 = vpop.permute.xlu0 %49
  %53 = vset.pattern.permute.xlu0 0
  %54 = vperm.xlu0 %53, %v44
  %v55 = vpop.permute.xlu0 %54
  %58 = vset.pattern.permute.xlu0 0
  %59 = vperm.xlu0 %58, %v45
  %v60 = vpop.permute.xlu0 %59
  %63 = vset.pattern.permute.xlu0 0
  %64 = vperm.xlu0 %63, %v46
  %v65 = vpop.permute.xlu0 %64
  %v71 = vunpack.c.l.b16 %v29
  %v72 = vunpack.c.l.b16 %v30
  %v73 = vunpack.c.l.b16 %v31
  %v74 = vunpack.c.l.b16 %v32
  %v75 = vpack.c.b16 %v72, %v71
  %v76 = vpack.c.b16 %v74, %v73
  %v87 = vunpack.c.l.b16 %v33
  %v88 = vunpack.c.l.b16 %v34
  %v89 = vunpack.c.l.b16 %v35
  %v90 = vunpack.c.l.b16 %v36
  %v91 = vunpack.c.l.b16 %v37
  %v92 = vunpack.c.l.b16 %v38
  %v93 = vunpack.c.l.b16 %v39
  %v94 = vunpack.c.l.b16 %v40
  %v95 = vunpack.c.l.b16 %v41
  %v96 = vunpack.c.l.b16 %v42
  %v97 = vpack.c.b16 %v88, %v87
  %v98 = vpack.c.b16 %v90, %v89
  %v99 = vpack.c.b16 %v92, %v91
  %v100 = vpack.c.b16 %v94, %v93
  %v101 = vpack.c.b16 %v96, %v95
  %vm107 = vcmask 654336
  %v109 = vsel %vm107, %v75, 0
  %v112 = vsel %vm107, %v76, 0
  %114 = vmatprep.subr.bf16.mxu0 0
  %115 = vmatpush1.bf16.msra.mxu0 %v97
  %116 = vmatprep.subr.bf16.mxu0 0
  %117 = vmatpush1.bf16.msra.mxu0 %v98
  %118 = vmatprep.subr.bf16.mxu0 0
  %119 = vmatpush1.bf16.msra.mxu0 %v99
  %120 = vmatprep.subr.bf16.mxu0 0
  %121 = vmatpush1.bf16.msra.mxu0 %v100
  %122 = vmatprep.subr.bf16.mxu0 0
  %123 = vmatpush1.bf16.msra.mxu0 %v101
  %124 = vmatprep.subr.bf16.mxu0 0
  %125 = vmatpush1.bf16.msra.mxu0 0
  %126 = vmatprep.subr.bf16.mxu0 0
  %127 = vmatpush1.bf16.msra.mxu0 0
  %128 = vmatprep.subr.bf16.mxu0 0
  %129 = vmatpush1.bf16.msra.mxu0 0
  %130 = vmatprep.subr.bf16.mxu0 0
  %131 = vmatpush1.bf16.msra.mxu0 0
  %132 = vmatprep.subr.bf16.mxu0 0
  %133 = vmatpush1.bf16.msra.mxu0 0
  %134 = vmatprep.subr.bf16.mxu0 0
  %135 = vmatpush1.bf16.msra.mxu0 0
  %136 = vmatprep.subr.bf16.mxu0 0
  %137 = vmatpush1.bf16.msra.mxu0 0
  %138 = vmatprep.subr.bf16.mxu0 0
  %139 = vmatpush1.bf16.msra.mxu0 0
  %140 = vmatprep.subr.bf16.mxu0 0
  %141 = vmatpush1.bf16.msra.mxu0 0
  %142 = vmatprep.subr.bf16.mxu0 0
  %143 = vmatpush1.bf16.msra.mxu0 0
  %144 = vmatprep.subr.bf16.mxu0 0
  %145 = vmatpush1.bf16.msra.mxu0 0
  %146 = vmatprep.mubr.bf16.mxu0 0
  %147 = vmatmul.mubr.bf16.gmra.mrb[0].mxu0 %v109
  %v148 = vpop.f32.mrb[0].mxu0
  %v149 = vadd.f32 %v50, %v148
  %v150 = vpop.f32.mrb[0].mxu0
  %v151 = vpop.f32.mrb[0].mxu0
  %v152 = vadd.f32 %v55, %v151
  %v153 = vpop.f32.mrb[0].mxu0
  %154 = vmatprep.mubr.bf16.mxu0 0
  %155 = vmatmul.mubr.bf16.gmra.mrb[0].mxu0 %v112
  %v156 = vpop.f32.mrb[0].mxu0
  %v157 = vadd.f32 %v60, %v156
  %v158 = vpop.f32.mrb[0].mxu0
  %v159 = vpop.f32.mrb[0].mxu0
  %v160 = vadd.f32 %v65, %v159
  %v161 = vpop.f32.mrb[0].mxu0
  %162 = vdwg.mxu0
  %v163 = vmax.f32 %v149, 0.0
  %v164 = vmax.f32 %v152, 0.0
  %v165 = vmax.f32 %v157, 0.0
  %v166 = vmax.f32 %v160, 0.0
  %v167 = vld [vmem:[%s3] sm:$0xf]
  %v168 = vld [vmem:[%s3 + $0x4] sm:$0xf]
  %v169 = vld [vmem:[%s4] sm:$0xff]
  %v170 = vld [vmem:[%s4 + $0x8] sm:$0xff]
  %v171 = vpack.c.bf16 %v164, %v163
  %v172 = vpack.c.bf16 %v166, %v165
  %174 = vset.pattern.permute.xlu0 0
  %175 = vperm.xlu0 %174, %v169
  %v176 = vpop.permute.xlu0 %175
  %179 = vset.pattern.permute.xlu0 0
  %180 = vperm.xlu0 %179, %v170
  %v181 = vpop.permute.xlu0 %180
  %v185 = vunpack.c.l.b16 %v167
  %v186 = vunpack.c.l.b16 %v168
  %v187 = vpack.c.b16 %v186, %v185
  %vm188 = vcmask 261120
  %v190 = vsel %vm188, %v187, 0
  %192 = vmatprep.subr.bf16.mxu0 0
  %193 = vmatpush1.bf16.msra.mxu0 %v171
  %194 = vmatprep.subr.bf16.mxu0 0
  %195 = vmatpush1.bf16.msra.mxu0 %v172
  %196 = vmatprep.subr.bf16.mxu0 0
  %197 = vmatpush1.bf16.msra.mxu0 0
  %198 = vmatprep.subr.bf16.mxu0 0
  %199 = vmatpush1.bf16.msra.mxu0 0
  %200 = vmatprep.subr.bf16.mxu0 0
  %201 = vmatpush1.bf16.msra.mxu0 0
  %202 = vmatprep.subr.bf16.mxu0 0
  %203 = vmatpush1.bf16.msra.mxu0 0
  %204 = vmatprep.subr.bf16.mxu0 0
  %205 = vmatpush1.bf16.msra.mxu0 0
  %206 = vmatprep.subr.bf16.mxu0 0
  %207 = vmatpush1.bf16.msra.mxu0 0
  %208 = vmatprep.subr.bf16.mxu0 0
  %209 = vmatpush1.bf16.msra.mxu0 0
  %210 = vmatprep.subr.bf16.mxu0 0
  %211 = vmatpush1.bf16.msra.mxu0 0
  %212 = vmatprep.subr.bf16.mxu0 0
  %213 = vmatpush1.bf16.msra.mxu0 0
  %214 = vmatprep.subr.bf16.mxu0 0
  %215 = vmatpush1.bf16.msra.mxu0 0
  %216 = vmatprep.subr.bf16.mxu0 0
  %217 = vmatpush1.bf16.msra.mxu0 0
  %218 = vmatprep.subr.bf16.mxu0 0
  %219 = vmatpush1.bf16.msra.mxu0 0
  %220 = vmatprep.subr.bf16.mxu0 0
  %221 = vmatpush1.bf16.msra.mxu0 0
  %222 = vmatprep.subr.bf16.mxu0 0
  %223 = vmatpush1.bf16.msra.mxu0 0
  %224 = vmatprep.mubr.bf16.mxu0 0
  %225 = vmatmul.mubr.bf16.gmra.mrb[0].mxu0 %v190
  %v226 = vpop.f32.mrb[0].mxu0
  %v227 = vadd.f32 %v176, %v226
  %v228 = vpop.f32.mrb[0].mxu0
  %v229 = vpop.f32.mrb[0].mxu0
  %v230 = vadd.f32 %v181, %v229
  %v231 = vpop.f32.mrb[0].mxu0
  %232 = vdwg.mxu0
  %v233 = vmax.f32 %v227, 0.0
  %v234 = vmax.f32 %v230, 0.0
  %v235 = vld [vmem:[%s5] sm:$0xff]
  %v236 = vld [vmem:[%s5 + $0x8] sm:$0xff]
  %238 = vset.pattern.permute.xlu0 0
  %239 = vperm.xlu0 %238, %v235
  %v240 = vpop.permute.xlu0 %239
  %243 = vset.pattern.permute.xlu0 0
  %244 = vperm.xlu0 %243, %v236
  %v245 = vpop.permute.xlu0 %244
  %v247 = vmul.f32 %v233, %v240
  %v248 = vmul.f32 %v234, %v245
  %v249 = vadd.f32 %v247, %v248
  %v250 = vrot.slane %v249, 4
  %v251 = vadd.f32 %v249, %v250
  %v252 = vrot.slane %v251, 2
  %v253 = vadd.f32 %v251, %v252
  %v254 = vrot.slane %v253, 1
  %v255 = vadd.f32 %v253, %v254
  %v256 = vld [vmem:[#allocation2] sm:$0x1]
  %258 = vset.pattern.permute.xlu0 0
  %259 = vperm.xlu0 %258, %v256
  %v260 = vpop.permute.xlu0 %259
  %v262 = vlaneseq
  %v263 = vshrl.u32 %v262, 7
  %v264 = vsub.s32 0, %v263
  %v265 = vrot.slane %v260, %v264
  %v266 = vadd.f32 %v255, %v265
  %267 = vst [vmem:[%s7] sm:$0x1] %v266
  // Predicated region
  $region30: #{mlp_forward.1} parent=0 // pred_check
    _
  $region31: #{mlp_forward.1} parent=0 // pred_check_branch
    %269 = sbr.rel (0) target = $region33
  $region32: #{mlp_forward.1} parent=0 // pred_region
    _
  $region33: #{mlp_forward.1} parent=0 // pred_fallthru
    _
  // Predicated region
  $region34: #{mlp_forward.1} parent=0 // pred_check
    _
  $region35: #{mlp_forward.1} parent=0 // pred_check_branch
    %271 = sbr.rel (0) target = $region37
  $region36: #{mlp_forward.1} parent=0 // pred_region
    _
  $region37: #{mlp_forward.1} parent=0 // pred_fallthru
    _

</llo_original>
